<compile_context>
chip_gen: v7x
topology: tpu7x:2x2x1
jax: 0.10.0
libtpu: 0.0.40
codegen_flags: <defaults>
</compile_context>

<pallas_src>
import jax
import jax.numpy as jnp
from jax.experimental import pallas as pl
from jax.experimental.pallas import tpu as pltpu


def _pick_spatial_tile(hw, cap=16384):
    """Largest spatial tile: the whole row if it fits comfortably, otherwise the
    biggest multiple-of-128 divisor of hw not exceeding `cap` (VMEM stays tiny
    either way: per buffer <= (C_in+C_out)*cap*4 bytes)."""
    if hw <= cap:
        return hw
    best = None
    t = 128
    while t <= cap:
        if hw % t == 0:
            best = t
        t += 128
    return best if best is not None else hw


def pointwise_separable_conv(x, weight, gamma, beta, eps=1e-5):
    """x: (N, C_in, H, W) f32; weight: (C_out, C_in, 1, 1); gamma/beta: (C_out,)."""
    N, C_in, H, W = x.shape
    C_out = weight.shape[0]
    HW = H * W
    M = N * HW

    t_hw = _pick_spatial_tile(HW)
    n_hw = HW // t_hw

    x3 = x.reshape(N, C_in, HW).astype(jnp.float32)
    wt = weight.reshape(C_out, C_in).astype(jnp.float32)
    g2 = gamma.reshape(C_out, 1).astype(jnp.float32)
    b2 = beta.reshape(C_out, 1).astype(jnp.float32)

    inv_m = 1.0 / float(M)
    eps = float(eps)

    def kernel(x_ref, wt_ref, g_ref, b_ref, o_ref,
               sum_acc, sq_acc, scale_sc, shift_sc):
        p = pl.program_id(0)          # phase: 0 = stats, 1 = normalize
        n = pl.program_id(1)          # batch index
        j = pl.program_id(2)          # spatial tile index
        first_block = jnp.logical_and(n == 0, j == 0)

        def pointwise():
            # y = W @ x_tile  -> (C_out, t_hw), lane-dense output.
            xt = x_ref[...]
            w = wt_ref[...]
            if C_in <= 8:
                # Tiny contraction (K = C_in): do VPU broadcast FMAs instead of
                # pushing a K=4/M=8 matmul through the MXU (avoids MXU push/pop
                # latency on v5e; op is HBM-bound anyway).
                y = w[:, 0:1] * xt[0:1, :]
                for k in range(1, C_in):
                    y = y + w[:, k:k + 1] * xt[k:k + 1, :]
                return y
            return jnp.dot(w, xt, preferred_element_type=jnp.float32)

        # ---- Phase 0: per-channel batch statistics of y ---------------------
        @pl.when(p == 0)
        def _():
            @pl.when(first_block)
            def _():
                sum_acc[...] = jnp.zeros_like(sum_acc)
                sq_acc[...] = jnp.zeros_like(sq_acc)
            y = pointwise()
            sum_acc[...] += jnp.sum(y, axis=1, keepdims=True)
            sq_acc[...] += jnp.sum(y * y, axis=1, keepdims=True)

        # ---- Phase 1: fold stats into affine, recompute y, normalize --------
        @pl.when(p == 1)
        def _():
            @pl.when(first_block)
            def _():
                mean = sum_acc[...] * inv_m
                # Clamp guards E[y^2]-E[y]^2 cancellation for large M.
                var = jnp.maximum(sq_acc[...] * inv_m - mean * mean, 0.0)
                inv_std = jax.lax.rsqrt(var + eps)
                scale = g_ref[...] * inv_std
                scale_sc[...] = scale
                shift_sc[...] = b_ref[...] - mean * scale
            y = pointwise()
            o_ref[...] = (y * scale_sc[...] + shift_sc[...]).astype(o_ref.dtype)

    out3 = pl.pallas_call(
        kernel,
        out_shape=jax.ShapeDtypeStruct((N, C_out, HW), jnp.float32),
        grid_spec=pltpu.PrefetchScalarGridSpec(
            num_scalar_prefetch=0,
            grid=(2, N, n_hw),
            in_specs=[
                pl.BlockSpec((None, C_in, t_hw), lambda p, n, j: (n, 0, j)),
                pl.BlockSpec((C_out, C_in), lambda p, n, j: (0, 0)),
                pl.BlockSpec((C_out, 1), lambda p, n, j: (0, 0)),
                pl.BlockSpec((C_out, 1), lambda p, n, j: (0, 0)),
            ],
            # During phase 0 the output block index is pinned to (0,0,0) and the
            # kernel never writes it -> no garbage / duplicate HBM writeback;
            # phase 1 walks every (n, j) output block exactly once.
            out_specs=pl.BlockSpec((None, C_out, t_hw),
                                   lambda p, n, j: (n * p, 0, j * p)),
            scratch_shapes=[
                pltpu.VMEM((C_out, 1), jnp.float32),   # sum accumulator
                pltpu.VMEM((C_out, 1), jnp.float32),   # sum-of-squares accumulator
                pltpu.VMEM((C_out, 1), jnp.float32),   # folded scale
                pltpu.VMEM((C_out, 1), jnp.float32),   # folded shift
            ],
        ),
        # Cross-block accumulators + phase ordering require a sequential grid.
        # TODO(synk): on v7x (2 TCs) emit per-block partial sums (out block per
        # grid step) so the batch/spatial axes can be marked "parallel".
        compiler_params=pltpu.CompilerParams(
            dimension_semantics=("arbitrary", "arbitrary", "arbitrary")),
    )(x3, wt, g2, b2)

    return out3.reshape(N, C_out, H, W)


def reference(x, weight, gamma, beta, eps=1e-5):
    """Plain-JAX reference of the PyTorch forward (1x1 conv, bias=False, train-mode BN)."""
    N, C_in, H, W = x.shape
    C_out = weight.shape[0]
    w = weight.reshape(C_out, C_in)
    y = jnp.einsum("nchw,oc->nohw", x, w, precision=jax.lax.Precision.HIGHEST)
    mean = y.mean(axis=(0, 2, 3), keepdims=True)
    var = y.var(axis=(0, 2, 3), keepdims=True)  # biased variance, as BN normalizes with
    yhat = (y - mean) / jnp.sqrt(var + eps)
    return yhat * gamma.reshape(1, C_out, 1, 1) + beta.reshape(1, C_out, 1, 1)


if __name__ == "__main__":
    # Module config: in_channels=4, out_channels=8, kernel_size=1 (pointwise), bias=False.
    N, C_in, H, W = 2, 4, 16, 16
    C_out = 8

    key = jax.random.PRNGKey(0)
    kx, kw, kg, kb = jax.random.split(key, 4)
    x = jax.random.normal(kx, (N, C_in, H, W), dtype=jnp.float32)
    weight = jax.random.normal(kw, (C_out, C_in, 1, 1), dtype=jnp.float32) * 0.5
    gamma = jax.random.normal(kg, (C_out,), dtype=jnp.float32) * 0.1 + 1.0
    beta = jax.random.normal(kb, (C_out,), dtype=jnp.float32) * 0.1

    out = pointwise_separable_conv(x, weight, gamma, beta)
    out = jax.block_until_ready(out)

    ref = reference(x, weight, gamma, beta)
    assert out.shape == (N, C_out, H, W)
    assert jnp.allclose(out, ref, atol=1e-4, rtol=1e-4), "mismatch vs reference"

    print("KERNEL_OK")
</pallas_src>

<mosaic_0001>
module attributes {stable_mosaic.version = 11 : i64} {
  func.func @kernel(%arg0: i32, %arg1: i32, %arg2: i32, %arg3: memref<1x4x256xf32, #tpu.memory_space<vmem>>, %arg4: memref<8x4xf32, #tpu.memory_space<vmem>>, %arg5: memref<8x1xf32, #tpu.memory_space<vmem>>, %arg6: memref<8x1xf32, #tpu.memory_space<vmem>>, %arg7: memref<1x8x256xf32, #tpu.memory_space<vmem>>, %arg8: memref<8x1xf32, #tpu.memory_space<vmem>>, %arg9: memref<8x1xf32, #tpu.memory_space<vmem>>, %arg10: memref<8x1xf32, #tpu.memory_space<vmem>>, %arg11: memref<8x1xf32, #tpu.memory_space<vmem>>) attributes {dimension_semantics = [#tpu.dimension_semantics<arbitrary>, #tpu.dimension_semantics<arbitrary>, #tpu.dimension_semantics<arbitrary>], iteration_bounds = array<i64: 2, 2, 1>, scalar_prefetch = 0 : i64, scratch_operands = 4 : i64, tpu.core_type = #tpu.core_type<tc>, window_params = [{transform_indices = @transform_0, window_bounds = array<i64: 1, 4, 256>}, {pipeline_mode = #tpu.pipeline_mode<synchronous>, transform_indices = @transform_1, window_bounds = array<i64: 8, 4>}, {pipeline_mode = #tpu.pipeline_mode<synchronous>, transform_indices = @transform_2, window_bounds = array<i64: 8, 1>}, {pipeline_mode = #tpu.pipeline_mode<synchronous>, transform_indices = @transform_3, window_bounds = array<i64: 8, 1>}, {transform_indices = @transform_4, window_bounds = array<i64: 1, 8, 256>}]} {
    %c0_i32 = arith.constant 0 : i32
    %0 = arith.cmpi eq, %arg1, %c0_i32 : i32
    %c0_i32_0 = arith.constant 0 : i32
    %1 = arith.cmpi eq, %arg2, %c0_i32_0 : i32
    %2 = arith.andi %0, %1 : i1
    %c0_i32_1 = arith.constant 0 : i32
    %3 = arith.cmpi eq, %arg0, %c0_i32_1 : i32
    %4 = arith.extui %3 : i1 to i32
    %c0_i32_2 = arith.constant 0 : i32
    %5 = arith.cmpi ne, %4, %c0_i32_2 : i32
    scf.if %5 {
      %9 = arith.extui %2 : i1 to i32
      %c0_i32_4 = arith.constant 0 : i32
      %10 = arith.cmpi ne, %9, %c0_i32_4 : i32
      scf.if %10 {
        %cst_18 = arith.constant 0.000000e+00 : f32
        %48 = vector.broadcast %cst_18 : f32 to vector<8x1xf32>
        %c0_19 = arith.constant 0 : index
        %c0_20 = arith.constant 0 : index
        %49 = vector.load %arg8[%c0_19, %c0_20] : memref<8x1xf32, #tpu.memory_space<vmem>>, vector<8x1xf32>
        tpu.vector_store %arg8[%c0_19, %c0_20], %48 {strides = array<i32>} : memref<8x1xf32, #tpu.memory_space<vmem>>, vector<8x1xf32>,
        %cst_21 = arith.constant 0.000000e+00 : f32
        %50 = vector.broadcast %cst_21 : f32 to vector<8x1xf32>
        %c0_22 = arith.constant 0 : index
        %c0_23 = arith.constant 0 : index
        %51 = vector.load %arg9[%c0_22, %c0_23] : memref<8x1xf32, #tpu.memory_space<vmem>>, vector<8x1xf32>
        tpu.vector_store %arg9[%c0_22, %c0_23], %50 {strides = array<i32>} : memref<8x1xf32, #tpu.memory_space<vmem>>, vector<8x1xf32>,
      } else {
      }
      %c0 = arith.constant 0 : index
      %c0_5 = arith.constant 0 : index
      %c0_6 = arith.constant 0 : index
      %11 = vector.load %arg3[%c0, %c0_5, %c0_6] : memref<1x4x256xf32, #tpu.memory_space<vmem>>, vector<1x4x256xf32>
      %12 = vector.shape_cast %11 : vector<1x4x256xf32> to vector<4x256xf32>
      %c0_7 = arith.constant 0 : index
      %c0_8 = arith.constant 0 : index
      %13 = vector.load %arg4[%c0_7, %c0_8] : memref<8x4xf32, #tpu.memory_space<vmem>>, vector<8x4xf32>
      %14 = vector.extract_strided_slice %13 {offsets = [0, 0], sizes = [8, 1], strides = [1, 1]} : vector<8x4xf32> to vector<8x1xf32>
      %15 = vector.extract_strided_slice %12 {offsets = [0, 0], sizes = [1, 256], strides = [1, 1]} : vector<4x256xf32> to vector<1x256xf32>
      %16 = vector.broadcast %14 : vector<8x1xf32> to vector<8x256xf32>
      %17 = vector.broadcast %15 : vector<1x256xf32> to vector<8x256xf32>
      %18 = arith.mulf %16, %17 : vector<8x256xf32>
      %19 = vector.extract_strided_slice %13 {offsets = [0, 1], sizes = [8, 1], strides = [1, 1]} : vector<8x4xf32> to vector<8x1xf32>
      %20 = vector.extract_strided_slice %12 {offsets = [1, 0], sizes = [1, 256], strides = [1, 1]} : vector<4x256xf32> to vector<1x256xf32>
      %21 = vector.broadcast %19 : vector<8x1xf32> to vector<8x256xf32>
      %22 = vector.broadcast %20 : vector<1x256xf32> to vector<8x256xf32>
      %23 = arith.mulf %21, %22 : vector<8x256xf32>
      %24 = arith.addf %18, %23 : vector<8x256xf32>
      %25 = vector.extract_strided_slice %13 {offsets = [0, 2], sizes = [8, 1], strides = [1, 1]} : vector<8x4xf32> to vector<8x1xf32>
      %26 = vector.extract_strided_slice %12 {offsets = [2, 0], sizes = [1, 256], strides = [1, 1]} : vector<4x256xf32> to vector<1x256xf32>
      %27 = vector.broadcast %25 : vector<8x1xf32> to vector<8x256xf32>
      %28 = vector.broadcast %26 : vector<1x256xf32> to vector<8x256xf32>
      %29 = arith.mulf %27, %28 : vector<8x256xf32>
      %30 = arith.addf %24, %29 : vector<8x256xf32>
      %31 = vector.extract_strided_slice %13 {offsets = [0, 3], sizes = [8, 1], strides = [1, 1]} : vector<8x4xf32> to vector<8x1xf32>
      %32 = vector.extract_strided_slice %12 {offsets = [3, 0], sizes = [1, 256], strides = [1, 1]} : vector<4x256xf32> to vector<1x256xf32>
      %33 = vector.broadcast %31 : vector<8x1xf32> to vector<8x256xf32>
      %34 = vector.broadcast %32 : vector<1x256xf32> to vector<8x256xf32>
      %35 = arith.mulf %33, %34 : vector<8x256xf32>
      %36 = arith.addf %30, %35 : vector<8x256xf32>
      %c0_9 = arith.constant 0 : index
      %c0_10 = arith.constant 0 : index
      %37 = vector.load %arg8[%c0_9, %c0_10] : memref<8x1xf32, #tpu.memory_space<vmem>>, vector<8x1xf32>
      %cst = arith.constant dense<0.000000e+00> : vector<8xf32>
      %38 = vector.multi_reduction <add>, %36, %cst [1] : vector<8x256xf32> to vector<8xf32>
      %39 = vector.shape_cast %38 : vector<8xf32> to vector<8x1xf32>
      %40 = arith.addf %37, %39 : vector<8x1xf32>
      %c0_11 = arith.constant 0 : index
      %c0_12 = arith.constant 0 : index
      %41 = vector.load %arg8[%c0_11, %c0_12] : memref<8x1xf32, #tpu.memory_space<vmem>>, vector<8x1xf32>
      tpu.vector_store %arg8[%c0_11, %c0_12], %40 {strides = array<i32>} : memref<8x1xf32, #tpu.memory_space<vmem>>, vector<8x1xf32>,
      %c0_13 = arith.constant 0 : index
      %c0_14 = arith.constant 0 : index
      %42 = vector.load %arg9[%c0_13, %c0_14] : memref<8x1xf32, #tpu.memory_space<vmem>>, vector<8x1xf32>
      %43 = arith.mulf %36, %36 : vector<8x256xf32>
      %cst_15 = arith.constant dense<0.000000e+00> : vector<8xf32>
      %44 = vector.multi_reduction <add>, %43, %cst_15 [1] : vector<8x256xf32> to vector<8xf32>
      %45 = vector.shape_cast %44 : vector<8xf32> to vector<8x1xf32>
      %46 = arith.addf %42, %45 : vector<8x1xf32>
      %c0_16 = arith.constant 0 : index
      %c0_17 = arith.constant 0 : index
      %47 = vector.load %arg9[%c0_16, %c0_17] : memref<8x1xf32, #tpu.memory_space<vmem>>, vector<8x1xf32>
      tpu.vector_store %arg9[%c0_16, %c0_17], %46 {strides = array<i32>} : memref<8x1xf32, #tpu.memory_space<vmem>>, vector<8x1xf32>,
    } else {
    }
    %c1_i32 = arith.constant 1 : i32
    %6 = arith.cmpi eq, %arg0, %c1_i32 : i32
    %7 = arith.extui %6 : i1 to i32
    %c0_i32_3 = arith.constant 0 : i32
    %8 = arith.cmpi ne, %7, %c0_i32_3 : i32
    scf.if %8 {
      %9 = arith.extui %2 : i1 to i32
      %c0_i32_4 = arith.constant 0 : i32
      %10 = arith.cmpi ne, %9, %c0_i32_4 : i32
      scf.if %10 {
        %c0_16 = arith.constant 0 : index
        %c0_17 = arith.constant 0 : index
        %46 = vector.load %arg8[%c0_16, %c0_17] : memref<8x1xf32, #tpu.memory_space<vmem>>, vector<8x1xf32>
        %cst = arith.constant 0.001953125 : f32
        %47 = vector.broadcast %cst : f32 to vector<8x1xf32>
        %48 = arith.mulf %46, %47 : vector<8x1xf32>
        %c0_18 = arith.constant 0 : index
        %c0_19 = arith.constant 0 : index
        %49 = vector.load %arg9[%c0_18, %c0_19] : memref<8x1xf32, #tpu.memory_space<vmem>>, vector<8x1xf32>
        %cst_20 = arith.constant 0.001953125 : f32
        %50 = vector.broadcast %cst_20 : f32 to vector<8x1xf32>
        %51 = arith.mulf %49, %50 : vector<8x1xf32>
        %52 = arith.mulf %48, %48 : vector<8x1xf32>
        %53 = arith.subf %51, %52 : vector<8x1xf32>
        %cst_21 = arith.constant 0.000000e+00 : f32
        %54 = vector.broadcast %cst_21 : f32 to vector<8x1xf32>
        %55 = arith.maximumf %53, %54 : vector<8x1xf32>
        %cst_22 = arith.constant 9.99999974E-6 : f32
        %56 = vector.broadcast %cst_22 : f32 to vector<8x1xf32>
        %57 = arith.addf %55, %56 : vector<8x1xf32>
        %58 = math.rsqrt %57 : vector<8x1xf32>
        %c0_23 = arith.constant 0 : index
        %c0_24 = arith.constant 0 : index
        %59 = vector.load %arg5[%c0_23, %c0_24] : memref<8x1xf32, #tpu.memory_space<vmem>>, vector<8x1xf32>
        %60 = arith.mulf %59, %58 : vector<8x1xf32>
        %c0_25 = arith.constant 0 : index
        %c0_26 = arith.constant 0 : index
        %61 = vector.load %arg10[%c0_25, %c0_26] : memref<8x1xf32, #tpu.memory_space<vmem>>, vector<8x1xf32>
        tpu.vector_store %arg10[%c0_25, %c0_26], %60 {strides = array<i32>} : memref<8x1xf32, #tpu.memory_space<vmem>>, vector<8x1xf32>,
        %c0_27 = arith.constant 0 : index
        %c0_28 = arith.constant 0 : index
        %62 = vector.load %arg6[%c0_27, %c0_28] : memref<8x1xf32, #tpu.memory_space<vmem>>, vector<8x1xf32>
        %63 = arith.mulf %48, %60 : vector<8x1xf32>
        %64 = arith.subf %62, %63 : vector<8x1xf32>
        %c0_29 = arith.constant 0 : index
        %c0_30 = arith.constant 0 : index
        %65 = vector.load %arg11[%c0_29, %c0_30] : memref<8x1xf32, #tpu.memory_space<vmem>>, vector<8x1xf32>
        tpu.vector_store %arg11[%c0_29, %c0_30], %64 {strides = array<i32>} : memref<8x1xf32, #tpu.memory_space<vmem>>, vector<8x1xf32>,
      } else {
      }
      %c0 = arith.constant 0 : index
      %c0_5 = arith.constant 0 : index
      %c0_6 = arith.constant 0 : index
      %11 = vector.load %arg3[%c0, %c0_5, %c0_6] : memref<1x4x256xf32, #tpu.memory_space<vmem>>, vector<1x4x256xf32>
      %12 = vector.shape_cast %11 : vector<1x4x256xf32> to vector<4x256xf32>
      %c0_7 = arith.constant 0 : index
      %c0_8 = arith.constant 0 : index
      %13 = vector.load %arg4[%c0_7, %c0_8] : memref<8x4xf32, #tpu.memory_space<vmem>>, vector<8x4xf32>
      %14 = vector.extract_strided_slice %13 {offsets = [0, 0], sizes = [8, 1], strides = [1, 1]} : vector<8x4xf32> to vector<8x1xf32>
      %15 = vector.extract_strided_slice %12 {offsets = [0, 0], sizes = [1, 256], strides = [1, 1]} : vector<4x256xf32> to vector<1x256xf32>
      %16 = vector.broadcast %14 : vector<8x1xf32> to vector<8x256xf32>
      %17 = vector.broadcast %15 : vector<1x256xf32> to vector<8x256xf32>
      %18 = arith.mulf %16, %17 : vector<8x256xf32>
      %19 = vector.extract_strided_slice %13 {offsets = [0, 1], sizes = [8, 1], strides = [1, 1]} : vector<8x4xf32> to vector<8x1xf32>
      %20 = vector.extract_strided_slice %12 {offsets = [1, 0], sizes = [1, 256], strides = [1, 1]} : vector<4x256xf32> to vector<1x256xf32>
      %21 = vector.broadcast %19 : vector<8x1xf32> to vector<8x256xf32>
      %22 = vector.broadcast %20 : vector<1x256xf32> to vector<8x256xf32>
      %23 = arith.mulf %21, %22 : vector<8x256xf32>
      %24 = arith.addf %18, %23 : vector<8x256xf32>
      %25 = vector.extract_strided_slice %13 {offsets = [0, 2], sizes = [8, 1], strides = [1, 1]} : vector<8x4xf32> to vector<8x1xf32>
      %26 = vector.extract_strided_slice %12 {offsets = [2, 0], sizes = [1, 256], strides = [1, 1]} : vector<4x256xf32> to vector<1x256xf32>
      %27 = vector.broadcast %25 : vector<8x1xf32> to vector<8x256xf32>
      %28 = vector.broadcast %26 : vector<1x256xf32> to vector<8x256xf32>
      %29 = arith.mulf %27, %28 : vector<8x256xf32>
      %30 = arith.addf %24, %29 : vector<8x256xf32>
      %31 = vector.extract_strided_slice %13 {offsets = [0, 3], sizes = [8, 1], strides = [1, 1]} : vector<8x4xf32> to vector<8x1xf32>
      %32 = vector.extract_strided_slice %12 {offsets = [3, 0], sizes = [1, 256], strides = [1, 1]} : vector<4x256xf32> to vector<1x256xf32>
      %33 = vector.broadcast %31 : vector<8x1xf32> to vector<8x256xf32>
      %34 = vector.broadcast %32 : vector<1x256xf32> to vector<8x256xf32>
      %35 = arith.mulf %33, %34 : vector<8x256xf32>
      %36 = arith.addf %30, %35 : vector<8x256xf32>
      %c0_9 = arith.constant 0 : index
      %c0_10 = arith.constant 0 : index
      %37 = vector.load %arg10[%c0_9, %c0_10] : memref<8x1xf32, #tpu.memory_space<vmem>>, vector<8x1xf32>
      %38 = vector.broadcast %37 : vector<8x1xf32> to vector<8x256xf32>
      %39 = arith.mulf %36, %38 : vector<8x256xf32>
      %c0_11 = arith.constant 0 : index
      %c0_12 = arith.constant 0 : index
      %40 = vector.load %arg11[%c0_11, %c0_12] : memref<8x1xf32, #tpu.memory_space<vmem>>, vector<8x1xf32>
      %41 = vector.broadcast %40 : vector<8x1xf32> to vector<8x256xf32>
      %42 = arith.addf %39, %41 : vector<8x256xf32>
      %c0_13 = arith.constant 0 : index
      %c0_14 = arith.constant 0 : index
      %c0_15 = arith.constant 0 : index
      %43 = vector.load %arg7[%c0_13, %c0_14, %c0_15] : memref<1x8x256xf32, #tpu.memory_space<vmem>>, vector<1x8x256xf32>
      %44 = vector.shape_cast %43 : vector<1x8x256xf32> to vector<8x256xf32>
      %45 = vector.shape_cast %42 : vector<8x256xf32> to vector<1x8x256xf32>
      tpu.vector_store %arg7[%c0_13, %c0_14, %c0_15], %45 {strides = array<i32>} : memref<1x8x256xf32, #tpu.memory_space<vmem>>, vector<1x8x256xf32>,
    } else {
    }
    return
  }
  func.func @transform_0(%arg0: i32, %arg1: i32, %arg2: i32) -> (i32, i32, i32) {
    %c0_i32 = arith.constant 0 : i32
    %c0_i32_0 = arith.constant 0 : i32
    return %arg1, %c0_i32, %arg2 : i32, i32, i32
  }
  func.func @transform_1(%arg0: i32, %arg1: i32, %arg2: i32) -> (i32, i32) {
    %c0_i32 = arith.constant 0 : i32
    %c0_i32_0 = arith.constant 0 : i32
    %c0_i32_1 = arith.constant 0 : i32
    return %c0_i32, %c0_i32_0 : i32, i32
  }
  func.func @transform_2(%arg0: i32, %arg1: i32, %arg2: i32) -> (i32, i32) {
    %c0_i32 = arith.constant 0 : i32
    %c0_i32_0 = arith.constant 0 : i32
    %c0_i32_1 = arith.constant 0 : i32
    return %c0_i32, %c0_i32_0 : i32, i32
  }
  func.func @transform_3(%arg0: i32, %arg1: i32, %arg2: i32) -> (i32, i32) {
    %c0_i32 = arith.constant 0 : i32
    %c0_i32_0 = arith.constant 0 : i32
    %c0_i32_1 = arith.constant 0 : i32
    return %c0_i32, %c0_i32_0 : i32, i32
  }
  func.func @transform_4(%arg0: i32, %arg1: i32, %arg2: i32) -> (i32, i32, i32) {
    %0 = arith.muli %arg1, %arg0 : i32
    %1 = arith.muli %arg2, %arg0 : i32
    %c0_i32 = arith.constant 0 : i32
    %c0_i32_0 = arith.constant 0 : i32
    return %0, %c0_i32, %1 : i32, i32, i32
  }
}

</mosaic_0001>

<llo_original>
// kernel: tpu_custom_call.1
$region0: #{tpu_custom_call.1}
  #allocation0 [shape = 'u32[]', space=smem, size = 0x4, offset = 0x4, fixed_abs, tag = 'smem constant byte address 0x4 - core index']
  #allocation1 [shape = 'u32[144,128]{1,0:T(1,128)}', space=vmem, size = 0x12000, scoped, tag = 'internal scratch']
  #allocation2 [shape = 'f32[8,1]{1,0:T(8,128)}', space=vmem, size = 0x1000, scoped, tag = 'scratch operand']
  #allocation3 [shape = 'f32[8,1]{1,0:T(8,128)}', space=vmem, size = 0x1000, scoped, tag = 'scratch operand']
  #allocation4 [shape = 'f32[8,1]{1,0:T(8,128)}', space=vmem, size = 0x1000, scoped, tag = 'scratch operand']
  #allocation5 [shape = 'f32[8,1]{1,0:T(8,128)}', space=vmem, size = 0x1000, scoped, tag = 'scratch operand']
  %s0 = inlined_call_operand.vmem [shape: f32[2,4,256], index: 0, kind: input, shape index: {}]
  %s1 = inlined_call_operand.vmem [shape: f32[8,4], index: 1, kind: input, shape index: {}]
  %s2 = inlined_call_operand.vmem [shape: f32[8,1], index: 2, kind: input, shape index: {}]
  %s3 = inlined_call_operand.vmem [shape: f32[8,1], index: 3, kind: input, shape index: {}]
  %s4 = inlined_call_operand.hbm [shape: f32[2,8,256], index: 4, kind: output, shape index: {}]
  %s5 = sld [smem:[#allocation0]]
  $region65: #{tpu_custom_call.1} parent=0
    _
  %s7 = ssub.s32 1, %s5
  %s8 = scalar_select 0, %s7, %s5
  $region1: #{tpu_custom_call.1} parent=0
    #allocation6 [shape = 'u8[16384]{0}', space=vmem, size = 0x4000, scoped, tag = 'output window, operand 0']
    #allocation7 [shape = 's32[2]{0}', space=sflag, size = 0x8, scoped, tag = 'scoped memory for tpu_custom_call.1']
    %9 = vsyncpa [#allocation7], 0
    %s10 = scalar_lea.sflag [#allocation7], 1
    %11 = vsyncpa %s10, 0
    loop: start=0, step=1, limit=6
    $region2: #{tpu_custom_call.1} parent=1 // loop_pre_header
      _
    $region3: #{tpu_custom_call.1} parent=1 // loop_header
      %s13 = sphi 0, %s17
      %p14 = scmp.ge.s32.totalorder %s13, 6
      %s20 = sphi 0, %s39
      %s21 = sphi 0, %s35
      %s22 = sphi 0, %s31
      %s23 = sphi 0, %s20
      %s24 = sphi 0, %s21
      %s25 = sphi 0, %s22
      %s26 = sphi 0, %s23
      %s27 = sphi 0, %s24
      %s28 = sphi 0, %s25
      %s44 = sphi 0, %s46
      %s47 = sphi 0, %s44
      %s48 = sphi 0, %s47
      %s64 = sphi 0, %s48
      %s68 = sphi 0, %s68
      %s70 = sphi 0, %s68
      %s71 = sphi 0, %s70
      %s85 = sphi 0, %s71
      %s89 = sphi 0, %s89
      %s91 = sphi 0, %s89
      %s92 = sphi 0, %s91
      %s106 = sphi 0, %s92
      %s110 = sphi 0, %s110
      %s112 = sphi 0, %s110
      %s113 = sphi 0, %s112
      %s127 = sphi 0, %s113
      %s139 = sphi 0, %s141
      %s142 = sphi 0, %s139
      %s143 = sphi 0, %s142
      %s159 = sphi 0, %s143
    $region4: #{tpu_custom_call.1} parent=1 // loop_header_branch
      %16 = sbr.rel (%p14) target = $region8
    $region5: #{tpu_custom_call.1} parent=1 // loop_body
      %s18 = ssub.s32 %s13, 1
      %s19 = ssub.s32 %s13, 2
      %s29 = sadd.s32 1, %s22
      %p30 = scmp.ge.s32.totalorder %s29, 1
      %s31 = scalar_select %p30, 0, %s29
      %s32 = sadd.s32 1, %s21
      %s33 = scalar_select %p30, %s32, %s21
      %p34 = scmp.ge.s32.totalorder %s33, 2
      %s35 = scalar_select %p34, 0, %s33
      %s36 = sadd.s32 1, %s20
      %s37 = scalar_select %p34, %s36, %s20
      %p38 = scmp.ge.s32.totalorder %s37, 2
      %s39 = scalar_select %p38, 0, %s37
      %s40 = ssub.s32 %s21, %s35
      %s41 = ssub.s32 %s22, %s31
      %s42 = sor.u32 %s40, %s41
      %p43 = scmp.eq.s32.totalorder %s42, 0
      %s45 = sadd.s32 %s44, 1
      %s46 = scalar_select %p43, %s44, %s45
      %p49 = pneg %p43
      %p50 = scmp.eq.s32.totalorder %s13, 3
      %p51 = por %p49, %p50
      %p52 = scmp.ne.s32.totalorder %s44, %s47
      %p53 = scmp.eq.s32.totalorder %s13, 0
      %p54 = por %p52, %p53
      %p55 = scmp.ne.s32.totalorder %s44, %s47
      %p56 = scmp.eq.s32.totalorder %s18, 3
      %p57 = por %p55, %p56
      %p58 = scmp.ne.s32.totalorder %s47, %s48
      %p59 = scmp.eq.s32.totalorder %s18, 0
      %p60 = por %p58, %p59
      %p61 = scmp.ne.s32.totalorder %s47, %s48
      %p62 = scmp.eq.s32.totalorder %s19, 3
      %p63 = por %p61, %p62
      %p65 = scmp.ne.s32.totalorder %s48, %s64
      %p66 = scmp.eq.s32.totalorder %s19, 0
      %p67 = por %p65, %p66
      %s69 = sadd.s32 %s68, 1
      %p72 = scmp.eq.s32.totalorder %s13, 3
      %p73 = scmp.ne.s32.totalorder %s68, %s70
      %p74 = scmp.eq.s32.totalorder %s13, 0
      %p75 = por %p73, %p74
      %p76 = scmp.ne.s32.totalorder %s68, %s70
      %p77 = scmp.eq.s32.totalorder %s18, 3
      %p78 = por %p76, %p77
      %p79 = scmp.ne.s32.totalorder %s70, %s71
      %p80 = scmp.eq.s32.totalorder %s18, 0
      %p81 = por %p79, %p80
      %p82 = scmp.ne.s32.totalorder %s70, %s71
      %p83 = scmp.eq.s32.totalorder %s19, 3
      %p84 = por %p82, %p83
      %p86 = scmp.ne.s32.totalorder %s71, %s85
      %p87 = scmp.eq.s32.totalorder %s19, 0
      %p88 = por %p86, %p87
      %s90 = sadd.s32 %s89, 1
      %p93 = scmp.eq.s32.totalorder %s13, 3
      %p94 = scmp.ne.s32.totalorder %s89, %s91
      %p95 = scmp.eq.s32.totalorder %s13, 0
      %p96 = por %p94, %p95
      %p97 = scmp.ne.s32.totalorder %s89, %s91
      %p98 = scmp.eq.s32.totalorder %s18, 3
      %p99 = por %p97, %p98
      %p100 = scmp.ne.s32.totalorder %s91, %s92
      %p101 = scmp.eq.s32.totalorder %s18, 0
      %p102 = por %p100, %p101
      %p103 = scmp.ne.s32.totalorder %s91, %s92
      %p104 = scmp.eq.s32.totalorder %s19, 3
      %p105 = por %p103, %p104
      %p107 = scmp.ne.s32.totalorder %s92, %s106
      %p108 = scmp.eq.s32.totalorder %s19, 0
      %p109 = por %p107, %p108
      %s111 = sadd.s32 %s110, 1
      %p114 = scmp.eq.s32.totalorder %s13, 3
      %p115 = scmp.ne.s32.totalorder %s110, %s112
      %p116 = scmp.eq.s32.totalorder %s13, 0
      %p117 = por %p115, %p116
      %p118 = scmp.ne.s32.totalorder %s110, %s112
      %p119 = scmp.eq.s32.totalorder %s18, 3
      %p120 = por %p118, %p119
      %p121 = scmp.ne.s32.totalorder %s112, %s113
      %p122 = scmp.eq.s32.totalorder %s18, 0
      %p123 = por %p121, %p122
      %p124 = scmp.ne.s32.totalorder %s112, %s113
      %p125 = scmp.eq.s32.totalorder %s19, 3
      %p126 = por %p124, %p125
      %p128 = scmp.ne.s32.totalorder %s113, %s127
      %p129 = scmp.eq.s32.totalorder %s19, 0
      %p130 = por %p128, %p129
      %s131 = smul.u32 %s21, %s20
      %s132 = smul.u32 %s22, %s20
      %s133 = smul.u32 %s35, %s39
      %s134 = smul.u32 %s31, %s39
      %s135 = ssub.s32 %s131, %s133
      %s136 = ssub.s32 %s132, %s134
      %s137 = sor.u32 %s135, %s136
      %p138 = scmp.eq.s32.totalorder %s137, 0
      %s140 = sadd.s32 %s139, 1
      %s141 = scalar_select %p138, %s139, %s140
      %p144 = pneg %p138
      %p145 = scmp.eq.s32.totalorder %s13, 3
      %p146 = por %p144, %p145
      %p147 = scmp.ne.s32.totalorder %s139, %s142
      %p148 = scmp.eq.s32.totalorder %s13, 0
      %p149 = por %p147, %p148
      %p150 = scmp.ne.s32.totalorder %s139, %s142
      %p151 = scmp.eq.s32.totalorder %s18, 3
      %p152 = por %p150, %p151
      %p153 = scmp.ne.s32.totalorder %s142, %s143
      %p154 = scmp.eq.s32.totalorder %s18, 0
      %p155 = por %p153, %p154
      %p156 = scmp.ne.s32.totalorder %s142, %s143
      %p157 = scmp.eq.s32.totalorder %s19, 3
      %p158 = por %p156, %p157
      %p160 = scmp.ne.s32.totalorder %s143, %s159
      %p161 = scmp.eq.s32.totalorder %s19, 0
      %p162 = por %p160, %p161
      %p163 = scmp.le.s32.totalorder 1, %s13
      %p164 = scmp.lt.s32.totalorder %s13, 5
      %p165 = pnand %p163, %p164
      %p166 = pneg %p165
      // Predicated region
      $region9: #{tpu_custom_call.1} parent=5 // pred_check
        _
      $region10: #{tpu_custom_call.1} parent=5 // pred_check_branch
        %168 = sbr.rel (%p165) target = $region12
      $region11: #{tpu_custom_call.1} parent=5 // pred_region
        %s169 = ssub.s32 %s13, 1
        // Predicated region
        $region13: #{tpu_custom_call.1} parent=11 // pred_check
          %p170 = pneg %p81
        $region14: #{tpu_custom_call.1} parent=11 // pred_check_branch
          %172 = sbr.rel (%p170) target = $region16
        $region15: #{tpu_custom_call.1} parent=11 // pred_region
          _
        $region16: #{tpu_custom_call.1} parent=11 // pred_fallthru
          _
        // Predicated region
        $region17: #{tpu_custom_call.1} parent=11 // pred_check
          %p173 = pneg %p102
        $region18: #{tpu_custom_call.1} parent=11 // pred_check_branch
          %175 = sbr.rel (%p173) target = $region20
        $region19: #{tpu_custom_call.1} parent=11 // pred_region
          _
        $region20: #{tpu_custom_call.1} parent=11 // pred_fallthru
          _
        // Predicated region
        $region21: #{tpu_custom_call.1} parent=11 // pred_check
          %p176 = pneg %p123
        $region22: #{tpu_custom_call.1} parent=11 // pred_check_branch
          %178 = sbr.rel (%p176) target = $region24
        $region23: #{tpu_custom_call.1} parent=11 // pred_region
          _
        $region24: #{tpu_custom_call.1} parent=11 // pred_fallthru
          _
      $region12: #{tpu_custom_call.1} parent=5 // pred_fallthru
        _
      %p179 = scmp.lt.s32.totalorder %s13, 4
      // Predicated region
      $region25: #{tpu_custom_call.1} parent=5 // pred_check
        %p180 = pneg %p179
      $region26: #{tpu_custom_call.1} parent=5 // pred_check_branch
        %182 = sbr.rel (%p180) target = $region28
      $region27: #{tpu_custom_call.1} parent=5 // pred_region
        // Predicated region
        $region29: #{tpu_custom_call.1} parent=27 // pred_check
          %p183 = pneg %p54
        $region30: #{tpu_custom_call.1} parent=27 // pred_check_branch
          %185 = sbr.rel (%p183) target = $region32
        $region31: #{tpu_custom_call.1} parent=27 // pred_region
          %s186 = smul.u32 2, %s22
          %p187 = scmp.lt.s32.totalorder %s21, 1
          %s188 = scalar_select %p187, %s21, 1
          %p189 = scmp.lt.s32.totalorder %s186, 1
          %s190 = scalar_select %p189, %s186, 1
          %s191 = smul.addr %s188, 2
          %s192 = sadd.s32 %s190, %s191
          %s193 = smul.addr %s192, 4
          %s194 = scalar_lea.vmem %s0, %s193
          %s195 = smul.u32 2, %s22
        $region32: #{tpu_custom_call.1} parent=27 // pred_fallthru
          _
      $region28: #{tpu_custom_call.1} parent=5 // pred_fallthru
        _
      %p196 = scmp.le.s32.totalorder 1, %s13
      %p197 = scmp.lt.s32.totalorder %s13, 5
      %p198 = pnand %p196, %p197
      %p199 = pneg %p198
      // Predicated region
      $region33: #{tpu_custom_call.1} parent=5 // pred_check
        _
      $region34: #{tpu_custom_call.1} parent=5 // pred_check_branch
        %201 = sbr.rel (%p198) target = $region36
      $region35: #{tpu_custom_call.1} parent=5 // pred_region
        %s202 = ssub.s32 %s13, 1
        %s203 = smul.u32 2, %s25
        %p204 = scmp.lt.s32.totalorder %s24, 1
        %s205 = scalar_select %p204, %s24, 1
        %p206 = scmp.lt.s32.totalorder %s203, 1
        %s207 = scalar_select %p206, %s203, 1
        %s208 = smul.addr %s205, 2
        %s209 = sadd.s32 %s207, %s208
        %s210 = smul.addr %s209, 4
        %s211 = scalar_lea.vmem %s0, %s210
        %p212 = pneg %p60
        %p213 = pneg %p57
        %p214 = pneg %p81
        %p215 = pneg %p78
        %p216 = pneg %p102
        %p217 = pneg %p99
        %p218 = pneg %p123
        %p219 = pneg %p120
        %p220 = pneg %p155
        %p221 = pneg %p152
        %s222 = sand.u32 %s142, 1
        %s223 = scalar_lea.sflag [#allocation7], %s222
        %s224 = sand.u32 %s142, 1
        %s225 = smul.addr %s224, 16
        %s226 = scalar_lea.vmem [#allocation6], %s225
        %s227 = smul.u32 2, %s25
        %p228 = scmp.lt.s32.totalorder %s24, 1
        %s229 = scalar_select %p228, %s24, 1
        %p230 = scmp.lt.s32.totalorder %s227, 1
        %s231 = scalar_select %p230, %s227, 1
        %s232 = smul.addr %s229, 2
        %s233 = sadd.s32 %s231, %s232
        %s234 = smul.addr %s233, 4
        %s235 = scalar_lea.vmem %s0, %s234
        %s236 = smul.u32 2, %s25
        %s237 = smul.u32 %s24, %s23
        %s238 = smul.u32 %s25, %s23
        %s239 = smul.u32 2, %s238
        %p240 = scmp.eq.s32.totalorder %s24, 0
        %p241 = scmp.eq.s32.totalorder %s25, 0
        %p242 = pnand %p240, %p241
        %p243 = pneg %p242
        %p244 = scmp.eq.s32.totalorder %s23, 0
        // Predicated region
        $region37: #{tpu_custom_call.1} parent=35 // pred_check
          %p245 = pneg %p244
        $region38: #{tpu_custom_call.1} parent=35 // pred_check_branch
          %247 = sbr.rel (%p245) target = $region40
        $region39: #{tpu_custom_call.1} parent=35 // pred_region
          // Predicated region
          $region41: #{tpu_custom_call.1} parent=39 // pred_check
            _
          $region42: #{tpu_custom_call.1} parent=39 // pred_check_branch
            %249 = sbr.rel (%p242) target = $region44
          $region43: #{tpu_custom_call.1} parent=39 // pred_region
            %vm250 = vcmask 7168
            %251 = vst.msk [vmem:[#allocation2] sm:$0xff] %vm250, 0.0
            %252 = vst.msk [vmem:[#allocation3] sm:$0xff] %vm250, 0.0
          $region44: #{tpu_custom_call.1} parent=39 // pred_fallthru
            _
          %v253 = vld [vmem:[%s235] sm:$0xff]
          %v254 = vld [vmem:[%s1] sm:$0xff]
          %256 = vset.pattern.permute.xlu0 0
          %257 = vperm.xlu0 %256, %v254
          %v258 = vpop.permute.xlu0 %257
          %v261 = vlaneseq
          %v262 = vshrl.u32 %v261, 7
          %v263 = vsub.s32 0, %v262
          %v264 = vrot.slane %v253, %v263
          %v265 = vlaneseq
          %v266 = vshrl.u32 %v265, 7
          %v267 = vsub.s32 4, %v266
          %v268 = vrot.slane %v253, %v267
          %v271 = vlaneseq
          %v272 = vshrl.u32 %v271, 7
          %v273 = vsub.s32 0, %v272
          %v274 = vrot.slane %v264, %v273
          %v275 = vlaneseq
          %v276 = vshrl.u32 %v275, 7
          %v277 = vsub.s32 0, %v276
          %v278 = vrot.slane %v268, %v277
          %v279 = vmul.f32 %v258, %v274
          %v280 = vmul.f32 %v258, %v278
          %281 = vset.pattern.permute.xlu0 1
          %282 = vperm.xlu0 %281, %v254
          %v283 = vpop.permute.xlu0 %282
          %v285 = vlaneseq
          %v286 = vshrl.u32 %v285, 7
          %v287 = vsub.s32 1, %v286
          %v288 = vrot.slane %v253, %v287
          %v289 = vlaneseq
          %v290 = vshrl.u32 %v289, 7
          %v291 = vsub.s32 5, %v290
          %v292 = vrot.slane %v253, %v291
          %v295 = vlaneseq
          %v296 = vshrl.u32 %v295, 7
          %v297 = vsub.s32 1, %v296
          %v298 = vrot.slane %v288, %v297
          %v299 = vlaneseq
          %v300 = vshrl.u32 %v299, 7
          %v301 = vsub.s32 1, %v300
          %v302 = vrot.slane %v292, %v301
          %v303 = vmul.f32 %v283, %v298
          %v304 = vmul.f32 %v283, %v302
          %v305 = vadd.f32 %v279, %v303
          %v306 = vadd.f32 %v280, %v304
          %307 = vset.pattern.permute.xlu0 2
          %308 = vperm.xlu0 %307, %v254
          %v309 = vpop.permute.xlu0 %308
          %v311 = vlaneseq
          %v312 = vshrl.u32 %v311, 7
          %v313 = vsub.s32 2, %v312
          %v314 = vrot.slane %v253, %v313
          %v315 = vlaneseq
          %v316 = vshrl.u32 %v315, 7
          %v317 = vsub.s32 6, %v316
          %v318 = vrot.slane %v253, %v317
          %v321 = vlaneseq
          %v322 = vshrl.u32 %v321, 7
          %v323 = vsub.s32 2, %v322
          %v324 = vrot.slane %v314, %v323
          %v325 = vlaneseq
          %v326 = vshrl.u32 %v325, 7
          %v327 = vsub.s32 2, %v326
          %v328 = vrot.slane %v318, %v327
          %v329 = vmul.f32 %v309, %v324
          %v330 = vmul.f32 %v309, %v328
          %v331 = vadd.f32 %v305, %v329
          %v332 = vadd.f32 %v306, %v330
          %333 = vset.pattern.permute.xlu0 3
          %334 = vperm.xlu0 %333, %v254
          %v335 = vpop.permute.xlu0 %334
          %v337 = vlaneseq
          %v338 = vshrl.u32 %v337, 7
          %v339 = vsub.s32 3, %v338
          %v340 = vrot.slane %v253, %v339
          %v341 = vlaneseq
          %v342 = vshrl.u32 %v341, 7
          %v343 = vsub.s32 7, %v342
          %v344 = vrot.slane %v253, %v343
          %v347 = vlaneseq
          %v348 = vshrl.u32 %v347, 7
          %v349 = vsub.s32 3, %v348
          %v350 = vrot.slane %v340, %v349
          %v351 = vlaneseq
          %v352 = vshrl.u32 %v351, 7
          %v353 = vsub.s32 3, %v352
          %v354 = vrot.slane %v344, %v353
          %v355 = vmul.f32 %v335, %v350
          %v356 = vmul.f32 %v335, %v354
          %v357 = vadd.f32 %v331, %v355
          %v358 = vadd.f32 %v332, %v356
          %v359 = vld [vmem:[#allocation2] sm:$0xff]
          %v360 = vadd.f32 %v357, %v358
          %361 = vadd.xlane.f32.xlu0 %v360
          %v362 = vpop.xlane.xlu0 %361
          %v363 = vadd.f32 %v359, %v362
          %vm364 = vcmask 7168
          %365 = vst.msk [vmem:[#allocation2] sm:$0xff] %vm364, %v363
          %v366 = vld [vmem:[#allocation3] sm:$0xff]
          %v367 = vmul.f32 %v357, %v357
          %v368 = vmul.f32 %v358, %v358
          %v369 = vadd.f32 %v367, %v368
          %370 = vadd.xlane.f32.xlu0 %v369
          %v371 = vpop.xlane.xlu0 %370
          %v372 = vadd.f32 %v366, %v371
          %373 = vst.msk [vmem:[#allocation3] sm:$0xff] %vm364, %v372
        $region40: #{tpu_custom_call.1} parent=35 // pred_fallthru
          _
        %p374 = scmp.eq.s32.totalorder %s23, 1
        // Predicated region
        $region45: #{tpu_custom_call.1} parent=35 // pred_check
          %p375 = pneg %p374
        $region46: #{tpu_custom_call.1} parent=35 // pred_check_branch
          %377 = sbr.rel (%p375) target = $region48
        $region47: #{tpu_custom_call.1} parent=35 // pred_region
          // Predicated region
          $region49: #{tpu_custom_call.1} parent=47 // pred_check
            _
          $region50: #{tpu_custom_call.1} parent=47 // pred_check_branch
            %379 = sbr.rel (%p242) target = $region52
          $region51: #{tpu_custom_call.1} parent=47 // pred_region
            %v380 = vld [vmem:[#allocation2] sm:$0xff]
            %v381 = vmul.f32 %v380, 0.001953125
            %v382 = vld [vmem:[#allocation3] sm:$0xff]
            %v383 = vmul.f32 %v382, 0.001953125
            %v384 = vmul.f32 %v381, %v381
            %v385 = vsub.f32 %v383, %v384
            %v386 = vmax.f32 %v385, 0.0
            %v387 = vadd.f32 %v386, 1e-05
            %v388 = vrsqrt.pop %v387
            %v389 = vld [vmem:[%s2] sm:$0xff]
            %v390 = vmul.f32 %v389, %v388
            %vm391 = vcmask 7168
            %392 = vst.msk [vmem:[#allocation4] sm:$0xff] %vm391, %v390
            %v393 = vld [vmem:[%s3] sm:$0xff]
            %v394 = vmul.f32 %v381, %v390
            %v395 = vsub.f32 %v393, %v394
            %396 = vst.msk [vmem:[#allocation5] sm:$0xff] %vm391, %v395
          $region52: #{tpu_custom_call.1} parent=47 // pred_fallthru
            _
          %v397 = vld [vmem:[%s235] sm:$0xff]
          %v398 = vld [vmem:[%s1] sm:$0xff]
          %400 = vset.pattern.permute.xlu0 0
          %401 = vperm.xlu0 %400, %v398
          %v402 = vpop.permute.xlu0 %401
          %v405 = vlaneseq
          %v406 = vshrl.u32 %v405, 7
          %v407 = vsub.s32 0, %v406
          %v408 = vrot.slane %v397, %v407
          %v409 = vlaneseq
          %v410 = vshrl.u32 %v409, 7
          %v411 = vsub.s32 4, %v410
          %v412 = vrot.slane %v397, %v411
          %v415 = vlaneseq
          %v416 = vshrl.u32 %v415, 7
          %v417 = vsub.s32 0, %v416
          %v418 = vrot.slane %v408, %v417
          %v419 = vlaneseq
          %v420 = vshrl.u32 %v419, 7
          %v421 = vsub.s32 0, %v420
          %v422 = vrot.slane %v412, %v421
          %v423 = vmul.f32 %v402, %v418
          %v424 = vmul.f32 %v402, %v422
          %425 = vset.pattern.permute.xlu0 1
          %426 = vperm.xlu0 %425, %v398
          %v427 = vpop.permute.xlu0 %426
          %v429 = vlaneseq
          %v430 = vshrl.u32 %v429, 7
          %v431 = vsub.s32 1, %v430
          %v432 = vrot.slane %v397, %v431
          %v433 = vlaneseq
          %v434 = vshrl.u32 %v433, 7
          %v435 = vsub.s32 5, %v434
          %v436 = vrot.slane %v397, %v435
          %v439 = vlaneseq
          %v440 = vshrl.u32 %v439, 7
          %v441 = vsub.s32 1, %v440
          %v442 = vrot.slane %v432, %v441
          %v443 = vlaneseq
          %v444 = vshrl.u32 %v443, 7
          %v445 = vsub.s32 1, %v444
          %v446 = vrot.slane %v436, %v445
          %v447 = vmul.f32 %v427, %v442
          %v448 = vmul.f32 %v427, %v446
          %v449 = vadd.f32 %v423, %v447
          %v450 = vadd.f32 %v424, %v448
          %451 = vset.pattern.permute.xlu0 2
          %452 = vperm.xlu0 %451, %v398
          %v453 = vpop.permute.xlu0 %452
          %v455 = vlaneseq
          %v456 = vshrl.u32 %v455, 7
          %v457 = vsub.s32 2, %v456
          %v458 = vrot.slane %v397, %v457
          %v459 = vlaneseq
          %v460 = vshrl.u32 %v459, 7
          %v461 = vsub.s32 6, %v460
          %v462 = vrot.slane %v397, %v461
          %v465 = vlaneseq
          %v466 = vshrl.u32 %v465, 7
          %v467 = vsub.s32 2, %v466
          %v468 = vrot.slane %v458, %v467
          %v469 = vlaneseq
          %v470 = vshrl.u32 %v469, 7
          %v471 = vsub.s32 2, %v470
          %v472 = vrot.slane %v462, %v471
          %v473 = vmul.f32 %v453, %v468
          %v474 = vmul.f32 %v453, %v472
          %v475 = vadd.f32 %v449, %v473
          %v476 = vadd.f32 %v450, %v474
          %477 = vset.pattern.permute.xlu0 3
          %478 = vperm.xlu0 %477, %v398
          %v479 = vpop.permute.xlu0 %478
          %v481 = vlaneseq
          %v482 = vshrl.u32 %v481, 7
          %v483 = vsub.s32 3, %v482
          %v484 = vrot.slane %v397, %v483
          %v485 = vlaneseq
          %v486 = vshrl.u32 %v485, 7
          %v487 = vsub.s32 7, %v486
          %v488 = vrot.slane %v397, %v487
          %v491 = vlaneseq
          %v492 = vshrl.u32 %v491, 7
          %v493 = vsub.s32 3, %v492
          %v494 = vrot.slane %v484, %v493
          %v495 = vlaneseq
          %v496 = vshrl.u32 %v495, 7
          %v497 = vsub.s32 3, %v496
          %v498 = vrot.slane %v488, %v497
          %v499 = vmul.f32 %v479, %v494
          %v500 = vmul.f32 %v479, %v498
          %v501 = vadd.f32 %v475, %v499
          %v502 = vadd.f32 %v476, %v500
          %v503 = vld [vmem:[#allocation4] sm:$0xff]
          %505 = vset.pattern.permute.xlu0 0
          %506 = vperm.xlu0 %505, %v503
          %v507 = vpop.permute.xlu0 %506
          %v509 = vmul.f32 %v501, %v507
          %v510 = vmul.f32 %v502, %v507
          %v511 = vld [vmem:[#allocation5] sm:$0xff]
          %513 = vset.pattern.permute.xlu0 0
          %514 = vperm.xlu0 %513, %v511
          %v515 = vpop.permute.xlu0 %514
          %v517 = vadd.f32 %v509, %v515
          %v518 = vadd.f32 %v510, %v515
          %519 = vst [vmem:[%s226] sm:$0xff] %v517
          %520 = vst [vmem:[%s226 + $0x8] sm:$0xff] %v518
        $region48: #{tpu_custom_call.1} parent=35 // pred_fallthru
          _
        %s521 = sand.u32 %s142, 1
        %s522 = scalar_lea.sflag [#allocation7], %s521
        %s523 = sand.u32 %s142, 1
        %s524 = smul.addr %s523, 16
        %s525 = scalar_lea.vmem [#allocation6], %s524
        // Predicated region
        $region53: #{tpu_custom_call.1} parent=35 // pred_check
          %p526 = pneg %p152
        $region54: #{tpu_custom_call.1} parent=35 // pred_check_branch
          %528 = sbr.rel (%p526) target = $region56
        $region55: #{tpu_custom_call.1} parent=35 // pred_region
          %s529 = smul.u32 %s24, %s23
          %s530 = smul.u32 %s25, %s23
          %s531 = smul.u32 2, %s530
          %s533 = ssub.s32 256, 256
          %534 = vsyncadd %s522, %s533
          %s535 = smul.addr %s529, 2
          %s536 = sadd.s32 %s531, %s535
          %s537 = smul.addr %s536, 128
          %s538 = scalar_lea.hbm %s4, %s537
          %s540 = sshll.u32 %s525, 4
          %s541 = int_to_ptr.vmem [resolvable:$true] %s540
          %543 = dma.vmem_to_hbm [thread:$0]  %s541, 256, %s538, %s522
        $region56: #{tpu_custom_call.1} parent=35 // pred_fallthru
          _
      $region36: #{tpu_custom_call.1} parent=5 // pred_fallthru
        _
      %p544 = scmp.le.s32.totalorder 2, %s13
      // Predicated region
      $region57: #{tpu_custom_call.1} parent=5 // pred_check
        %p545 = pneg %p544
      $region58: #{tpu_custom_call.1} parent=5 // pred_check_branch
        %547 = sbr.rel (%p545) target = $region60
      $region59: #{tpu_custom_call.1} parent=5 // pred_region
        %s548 = ssub.s32 %s13, 2
        // Predicated region
        $region61: #{tpu_custom_call.1} parent=59 // pred_check
          %p549 = pneg %p158
        $region62: #{tpu_custom_call.1} parent=59 // pred_check_branch
          %551 = sbr.rel (%p549) target = $region64
        $region63: #{tpu_custom_call.1} parent=59 // pred_region
          %s552 = sand.u32 %s143, 1
          %s553 = scalar_lea.sflag [#allocation7], %s552
          %s554 = sand.u32 %s143, 1
          %s555 = smul.addr %s554, 16
          %s556 = scalar_lea.vmem [#allocation6], %s555
          %557 = dma.done %s553, 256
        $region64: #{tpu_custom_call.1} parent=59 // pred_fallthru
          _
      $region60: #{tpu_custom_call.1} parent=5 // pred_fallthru
        _
    $region6: #{tpu_custom_call.1} parent=1 // loop_footer
      %s17 = sadd.s32 1, %s13
    $region7: #{tpu_custom_call.1} parent=1 // loop_footer_branch
      %12 = sbr.rel target = $region3
    $region8: #{tpu_custom_call.1} parent=1 // loop_exit
      _
    %558 = vsyncpa [#allocation7], 1
    %s559 = scalar_lea.sflag [#allocation7], 1
    %560 = vsyncpa %s559, 1

</llo_original>
